<compile_context>
chip_gen: v5e
topology: v5e:2x2
jax: 0.10.0
libtpu: 0.0.40
codegen_flags: <defaults>
</compile_context>

<pallas_src>
import functools
import math

import jax
import jax.numpy as jnp
from jax.experimental import pallas as pl
from jax.experimental.pallas import tpu as pltpu


def _self_attention_kernel(x_ref, w_ref, o_ref, q_s, k_s, v_s, *,
                           dim_k, dim_v, tq, norm_fact):
    # x_ref: (C, N) for the current batch element (leading dim squeezed)
    # w_ref: (N, 2K+V) fused [Wq^T | Wk^T | Wv^T]
    # o_ref: (TQ, V) output tile
    t = pl.program_id(1)

    @pl.when(t == 0)
    def _():
        # One fused projection matmul per batch element: (C, N) @ (N, 2K+V).
        qkv = jnp.dot(x_ref[...], w_ref[...],
                      preferred_element_type=jnp.float32)
        q_s[...] = qkv[:, :dim_k] * norm_fact           # pre-scale q once
        k_s[...] = qkv[:, dim_k:2 * dim_k]
        v_s[...] = qkv[:, 2 * dim_k:]

    start = pl.multiple_of(t * tq, tq)
    q = q_s[pl.ds(start, tq), :]                        # (TQ, K)

    # Scores: contract K of q with K of k -- no k.T materialization.
    s = jax.lax.dot_general(
        q, k_s[...],
        dimension_numbers=(((1,), (1,)), ((), ())),
        preferred_element_type=jnp.float32)             # (TQ, C)

    # Numerically stable softmax over the last axis (f32 throughout).
    m = jnp.max(s, axis=-1, keepdims=True)
    e = jnp.exp(s - m)
    denom = jnp.sum(e, axis=-1, keepdims=True)
    inv = pl.reciprocal(denom, approx=True)             # EUP slot
    inv = inv * (2.0 - denom * inv)                     # one Newton step
    p = e * inv                                         # (TQ, C)

    att = jnp.dot(p.astype(v_s.dtype), v_s[...],
                  preferred_element_type=jnp.float32)   # (TQ, V)
    o_ref[...] = att.astype(o_ref.dtype)


def _choose_tq(c):
    """Query-row tile: full C when small, else a multiple of 8 dividing C."""
    if c <= 1024:
        return c
    for cand in (512, 256, 128, 64, 32, 16, 8):
        if c % cand == 0:
            return cand
    return c


def self_attention(x, wq, wk, wv, *, tq=None):
    """x: (B, C, N); wq/wk: (dim_k, N); wv: (dim_v, N) in PyTorch Linear layout."""
    B, C, N = x.shape
    dim_k = wq.shape[0]
    dim_v = wv.shape[0]
    assert wq.shape == (dim_k, N) and wk.shape == (dim_k, N) and wv.shape == (dim_v, N)
    norm_fact = 1.0 / math.sqrt(dim_k)

    if tq is None:
        tq = _choose_tq(C)
    num_q_tiles = pl.cdiv(C, tq)

    # Fuse + pre-transpose weights once in glue code: (N, 2K+V), MXU-native dtype.
    w_fused = jnp.concatenate([wq.T, wk.T, wv.T], axis=1).astype(x.dtype)

    kernel = functools.partial(
        _self_attention_kernel,
        dim_k=dim_k, dim_v=dim_v, tq=tq, norm_fact=norm_fact)

    return pl.pallas_call(
        kernel,
        out_shape=jax.ShapeDtypeStruct((B, C, dim_v), x.dtype),
        grid_spec=pltpu.PrefetchScalarGridSpec(
            num_scalar_prefetch=0,
            grid=(B, num_q_tiles),
            in_specs=[
                # Full (C, N) slab per batch element (needed for k/v); leading
                # size-1 batch dim squeezed out of the kernel ref.
                pl.BlockSpec((pl.Squeezed(), C, N), lambda b, t: (b, 0, 0)),
                # Fused weights, resident across the whole grid.
                pl.BlockSpec((N, 2 * dim_k + dim_v), lambda b, t: (0, 0)),
            ],
            out_specs=pl.BlockSpec((pl.Squeezed(), tq, dim_v),
                                   lambda b, t: (b, t, 0)),
            scratch_shapes=[
                pltpu.VMEM((C, dim_k), jnp.float32),    # q * norm_fact
                pltpu.VMEM((C, dim_k), jnp.float32),    # k
                pltpu.VMEM((C, dim_v), jnp.float32),    # v
            ]),
        compiler_params=pltpu.CompilerParams(
            dimension_semantics=("parallel", "arbitrary"),
            vmem_limit_bytes=48 * 1024 * 1024),
    )(x, w_fused)


def _reference(x, wq, wk, wv):
    """Plain-JAX reference matching the PyTorch forward."""
    dim_k = wq.shape[0]
    q = jnp.einsum("bcn,kn->bck", x, wq)
    k = jnp.einsum("bcn,kn->bck", x, wk)
    v = jnp.einsum("bcn,vn->bcv", x, wv)
    s = jnp.einsum("bck,bdk->bcd", q, k) / math.sqrt(dim_k)
    p = jax.nn.softmax(s, axis=-1)
    return jnp.einsum("bcd,bdv->bcv", p, v)


if __name__ == "__main__":
    # Small shapes consistent with the module: x (batch, c, n), n == dim_q.
    batch, c = 2, 8
    dim_q, dim_k, dim_v = 16, 32, 32

    key = jax.random.PRNGKey(0)
    kx, kq, kk, kv = jax.random.split(key, 4)

    x = jax.random.normal(kx, (batch, c, dim_q), dtype=jnp.float32)

    # nn.Linear default init: U(-1/sqrt(in_features), +1/sqrt(in_features)),
    # weight shape (out_features, in_features).
    bound = 1.0 / math.sqrt(dim_q)
    wq = jax.random.uniform(kq, (dim_k, dim_q), jnp.float32, -bound, bound)
    wk = jax.random.uniform(kk, (dim_k, dim_q), jnp.float32, -bound, bound)
    wv = jax.random.uniform(kv, (dim_v, dim_q), jnp.float32, -bound, bound)

    out = self_attention(x, wq, wk, wv)
    out = jax.block_until_ready(out)

    ref = _reference(x, wq, wk, wv)
    assert out.shape == (batch, c, dim_v)
    assert jnp.allclose(out, ref, atol=1e-3, rtol=1e-3), "mismatch vs reference"

    print("KERNEL_OK")
</pallas_src>

<mosaic_0001>
module attributes {stable_mosaic.version = 11 : i64} {
  func.func @_self_attention_kernel(%arg0: i32, %arg1: i32, %arg2: memref<1x8x16xf32, #tpu.memory_space<vmem>>, %arg3: memref<16x96xf32, #tpu.memory_space<vmem>>, %arg4: memref<1x8x32xf32, #tpu.memory_space<vmem>>, %arg5: memref<8x32xf32, #tpu.memory_space<vmem>>, %arg6: memref<8x32xf32, #tpu.memory_space<vmem>>, %arg7: memref<8x32xf32, #tpu.memory_space<vmem>>) attributes {dimension_semantics = [#tpu.dimension_semantics<parallel>, #tpu.dimension_semantics<arbitrary>], iteration_bounds = array<i64: 2, 1>, scalar_prefetch = 0 : i64, scratch_operands = 3 : i64, tpu.core_type = #tpu.core_type<tc>, window_params = [{transform_indices = @transform_0, window_bounds = array<i64: 1, 8, 16>}, {pipeline_mode = #tpu.pipeline_mode<synchronous>, transform_indices = @transform_1, window_bounds = array<i64: 16, 96>}, {transform_indices = @transform_2, window_bounds = array<i64: 1, 8, 32>}]} {
    %c0_i32 = arith.constant 0 : i32
    %0 = arith.cmpi eq, %arg1, %c0_i32 : i32
    %1 = arith.extui %0 : i1 to i32
    %c0_i32_0 = arith.constant 0 : i32
    %2 = arith.cmpi ne, %1, %c0_i32_0 : i32
    scf.if %2 {
      %c0_12 = arith.constant 0 : index
      %c0_13 = arith.constant 0 : index
      %c0_14 = arith.constant 0 : index
      %28 = vector.load %arg2[%c0_12, %c0_13, %c0_14] : memref<1x8x16xf32, #tpu.memory_space<vmem>>, vector<1x8x16xf32>
      %29 = vector.shape_cast %28 : vector<1x8x16xf32> to vector<8x16xf32>
      %c0_15 = arith.constant 0 : index
      %c0_16 = arith.constant 0 : index
      %30 = vector.load %arg3[%c0_15, %c0_16] : memref<16x96xf32, #tpu.memory_space<vmem>>, vector<16x96xf32>
      %cst_17 = arith.constant dense<0.000000e+00> : vector<8x96xf32>
      %31 = tpu.matmul %29, %30, %cst_17 {dimension_numbers = #tpu.dot_dimension_numbers<[1], [0], [0], [1], [0, 0, 1, 1], [], []>} : vector<8x16xf32>, vector<16x96xf32>, vector<8x96xf32> -> vector<8x96xf32>
      %32 = vector.extract_strided_slice %31 {offsets = [0, 0], sizes = [8, 32], strides = [1, 1]} : vector<8x96xf32> to vector<8x32xf32>
      %cst_18 = arith.constant 0.176776692 : f32
      %33 = vector.broadcast %cst_18 : f32 to vector<8x32xf32>
      %34 = arith.mulf %32, %33 : vector<8x32xf32>
      %c0_19 = arith.constant 0 : index
      %c0_20 = arith.constant 0 : index
      %35 = vector.load %arg5[%c0_19, %c0_20] : memref<8x32xf32, #tpu.memory_space<vmem>>, vector<8x32xf32>
      tpu.vector_store %arg5[%c0_19, %c0_20], %34 {strides = array<i32>} : memref<8x32xf32, #tpu.memory_space<vmem>>, vector<8x32xf32>,
      %36 = vector.extract_strided_slice %31 {offsets = [0, 32], sizes = [8, 32], strides = [1, 1]} : vector<8x96xf32> to vector<8x32xf32>
      %c0_21 = arith.constant 0 : index
      %c0_22 = arith.constant 0 : index
      %37 = vector.load %arg6[%c0_21, %c0_22] : memref<8x32xf32, #tpu.memory_space<vmem>>, vector<8x32xf32>
      tpu.vector_store %arg6[%c0_21, %c0_22], %36 {strides = array<i32>} : memref<8x32xf32, #tpu.memory_space<vmem>>, vector<8x32xf32>,
      %38 = vector.extract_strided_slice %31 {offsets = [0, 64], sizes = [8, 32], strides = [1, 1]} : vector<8x96xf32> to vector<8x32xf32>
      %c0_23 = arith.constant 0 : index
      %c0_24 = arith.constant 0 : index
      %39 = vector.load %arg7[%c0_23, %c0_24] : memref<8x32xf32, #tpu.memory_space<vmem>>, vector<8x32xf32>
      tpu.vector_store %arg7[%c0_23, %c0_24], %38 {strides = array<i32>} : memref<8x32xf32, #tpu.memory_space<vmem>>, vector<8x32xf32>,
    } else {
    }
    %c8_i32 = arith.constant 8 : i32
    %3 = arith.muli %arg1, %c8_i32 : i32
    %4 = tpu.assume_multiple %3, 8 : i32
    %5 = arith.index_cast %4 : i32 to index
    %c0 = arith.constant 0 : index
    %6 = vector.load %arg5[%5, %c0] : memref<8x32xf32, #tpu.memory_space<vmem>>, vector<8x32xf32>
    %c0_1 = arith.constant 0 : index
    %c0_2 = arith.constant 0 : index
    %7 = vector.load %arg6[%c0_1, %c0_2] : memref<8x32xf32, #tpu.memory_space<vmem>>, vector<8x32xf32>
    %cst = arith.constant dense<0.000000e+00> : vector<8x8xf32>
    %8 = tpu.matmul %6, %7, %cst {dimension_numbers = #tpu.dot_dimension_numbers<[1], [1], [0], [0], [0, 0, 1, 0], [], []>} : vector<8x32xf32>, vector<8x32xf32>, vector<8x8xf32> -> vector<8x8xf32>
    %cst_3 = arith.constant dense<0xFF800000> : vector<8xf32>
    %9 = vector.multi_reduction <maximumf>, %8, %cst_3 [1] : vector<8x8xf32> to vector<8xf32>
    %10 = vector.shape_cast %9 : vector<8xf32> to vector<8x1xf32>
    %11 = vector.broadcast %10 : vector<8x1xf32> to vector<8x8xf32>
    %12 = arith.subf %8, %11 : vector<8x8xf32>
    %13 = math.exp %12 : vector<8x8xf32>
    %cst_4 = arith.constant dense<0.000000e+00> : vector<8xf32>
    %14 = vector.multi_reduction <add>, %13, %cst_4 [1] : vector<8x8xf32> to vector<8xf32>
    %15 = vector.shape_cast %14 : vector<8xf32> to vector<8x1xf32>
    %16 = tpu.reciprocal %15 {approx = true} : vector<8x1xf32> -> vector<8x1xf32>
    %17 = arith.mulf %15, %16 : vector<8x1xf32>
    %cst_5 = arith.constant 2.000000e+00 : f32
    %18 = vector.broadcast %cst_5 : f32 to vector<8x1xf32>
    %19 = arith.subf %18, %17 : vector<8x1xf32>
    %20 = arith.mulf %16, %19 : vector<8x1xf32>
    %21 = vector.broadcast %20 : vector<8x1xf32> to vector<8x8xf32>
    %22 = arith.mulf %13, %21 : vector<8x8xf32>
    %c0_6 = arith.constant 0 : index
    %c0_7 = arith.constant 0 : index
    %23 = vector.load %arg7[%c0_6, %c0_7] : memref<8x32xf32, #tpu.memory_space<vmem>>, vector<8x32xf32>
    %cst_8 = arith.constant dense<0.000000e+00> : vector<8x32xf32>
    %24 = tpu.matmul %22, %23, %cst_8 {dimension_numbers = #tpu.dot_dimension_numbers<[1], [0], [0], [1], [0, 0, 1, 1], [], []>} : vector<8x8xf32>, vector<8x32xf32>, vector<8x32xf32> -> vector<8x32xf32>
    %c0_9 = arith.constant 0 : index
    %c0_10 = arith.constant 0 : index
    %c0_11 = arith.constant 0 : index
    %25 = vector.load %arg4[%c0_9, %c0_10, %c0_11] : memref<1x8x32xf32, #tpu.memory_space<vmem>>, vector<1x8x32xf32>
    %26 = vector.shape_cast %25 : vector<1x8x32xf32> to vector<8x32xf32>
    %27 = vector.shape_cast %24 : vector<8x32xf32> to vector<1x8x32xf32>
    tpu.vector_store %arg4[%c0_9, %c0_10, %c0_11], %27 {strides = array<i32>} : memref<1x8x32xf32, #tpu.memory_space<vmem>>, vector<1x8x32xf32>,
    return
  }
  func.func @transform_0(%arg0: i32, %arg1: i32) -> (i32, i32, i32) {
    %c0_i32 = arith.constant 0 : i32
    %c0_i32_0 = arith.constant 0 : i32
    %c0_i32_1 = arith.constant 0 : i32
    return %arg0, %c0_i32, %c0_i32_0 : i32, i32, i32
  }
  func.func @transform_1(%arg0: i32, %arg1: i32) -> (i32, i32) {
    %c0_i32 = arith.constant 0 : i32
    %c0_i32_0 = arith.constant 0 : i32
    %c0_i32_1 = arith.constant 0 : i32
    return %c0_i32, %c0_i32_0 : i32, i32
  }
  func.func @transform_2(%arg0: i32, %arg1: i32) -> (i32, i32, i32) {
    %c0_i32 = arith.constant 0 : i32
    %c0_i32_0 = arith.constant 0 : i32
    return %arg0, %arg1, %c0_i32 : i32, i32, i32
  }
}

</mosaic_0001>

<llo_original>
// kernel: tpu_custom_call.1
$region0: #{tpu_custom_call.1}
  #allocation0 [shape = 'u32[]', space=smem, size = 0x4, offset = 0x4, fixed_abs, tag = 'smem constant byte address 0x4 - core index']
  #allocation1 [shape = 'u32[72,128]{1,0:T(1,128)}', space=vmem, size = 0x9000, scoped, tag = 'internal scratch']
  #allocation2 [shape = 'f32[8,32]{1,0:T(8,128)}', space=vmem, size = 0x1000, scoped, tag = 'scratch operand']
  #allocation3 [shape = 'f32[8,32]{1,0:T(8,128)}', space=vmem, size = 0x1000, scoped, tag = 'scratch operand']
  #allocation4 [shape = 'f32[8,32]{1,0:T(8,128)}', space=vmem, size = 0x1000, scoped, tag = 'scratch operand']
  %s0 = inlined_call_operand.hbm [shape: f32[2,8,16], index: 0, kind: input, shape index: {}]
  %s1 = inlined_call_operand.hbm [shape: f32[16,96], index: 1, kind: input, shape index: {}]
  %s2 = inlined_call_operand.hbm [shape: f32[2,8,32], index: 2, kind: output, shape index: {}]
  %s3 = sld [smem:[#allocation0]]
  $region53: #{tpu_custom_call.1} parent=0
    _
  %s5 = ssub.s32 1, %s3
  %s6 = scalar_select 0, %s5, %s3
  $region1: #{tpu_custom_call.1} parent=0
    #allocation5 [shape = 'u8[8192]{0}', space=vmem, size = 0x2000, scoped, tag = 'input window, operand 0']
    #allocation6 [shape = 's32[2]{0}', space=sflag, size = 0x8, scoped, tag = 'scoped memory for tpu_custom_call.1']
    #allocation7 [shape = 's32[2]{0}', space=sflag, size = 0x8, scoped, tag = 'scoped memory for tpu_custom_call.1']
    #allocation8 [shape = 'u8[8192]{0}', space=vmem, size = 0x2000, scoped, tag = 'input window, operand 1, single buffered']
    #allocation9 [shape = 's32[1]{0}', space=sflag, size = 0x4, scoped, tag = 'scoped memory for tpu_custom_call.1']
    #allocation10 [shape = 'u8[8192]{0}', space=vmem, size = 0x2000, scoped, tag = 'output window, operand 0']
    %7 = vsyncpa [#allocation6], 0
    %s8 = scalar_lea.sflag [#allocation6], 1
    %9 = vsyncpa %s8, 0
    %10 = vsyncpa [#allocation9], 0
    %11 = vsyncpa [#allocation7], 0
    %s12 = scalar_lea.sflag [#allocation7], 1
    %13 = vsyncpa %s12, 0
    loop: start=0, step=1, limit=4
    $region2: #{tpu_custom_call.1} parent=1 // loop_pre_header
      _
    $region3: #{tpu_custom_call.1} parent=1 // loop_header
      %s15 = sphi 0, %s19
      %p16 = scmp.ge.s32.totalorder %s15, 4
      %s22 = sphi 0, %s34
      %s23 = sphi 0, %s30
      %s24 = sphi 0, %s22
      %s25 = sphi 0, %s23
      %s26 = sphi 0, %s24
      %s27 = sphi 0, %s25
      %s37 = sphi 0, %s39
      %s40 = sphi 0, %s37
      %s41 = sphi 0, %s40
      %s57 = sphi 0, %s41
      %s61 = sphi 0, %s61
      %s63 = sphi 0, %s61
      %s64 = sphi 0, %s63
      %s78 = sphi 0, %s64
      %s86 = sphi 0, %s88
      %s89 = sphi 0, %s86
      %s90 = sphi 0, %s89
      %s106 = sphi 0, %s90
    $region4: #{tpu_custom_call.1} parent=1 // loop_header_branch
      %18 = sbr.rel (%p16) target = $region8
    $region5: #{tpu_custom_call.1} parent=1 // loop_body
      %s20 = ssub.s32 %s15, 1
      %s21 = ssub.s32 %s15, 2
      %s28 = sadd.s32 1, %s23
      %p29 = scmp.ge.s32.totalorder %s28, 1
      %s30 = scalar_select %p29, 0, %s28
      %s31 = sadd.s32 1, %s22
      %s32 = scalar_select %p29, %s31, %s22
      %p33 = scmp.ge.s32.totalorder %s32, 2
      %s34 = scalar_select %p33, 0, %s32
      %s35 = ssub.s32 %s22, %s34
      %p36 = scmp.eq.s32.totalorder %s35, 0
      %s38 = sadd.s32 %s37, 1
      %s39 = scalar_select %p36, %s37, %s38
      %p42 = pneg %p36
      %p43 = scmp.eq.s32.totalorder %s15, 1
      %p44 = por %p42, %p43
      %p45 = scmp.ne.s32.totalorder %s37, %s40
      %p46 = scmp.eq.s32.totalorder %s15, 0
      %p47 = por %p45, %p46
      %p48 = scmp.ne.s32.totalorder %s37, %s40
      %p49 = scmp.eq.s32.totalorder %s20, 1
      %p50 = por %p48, %p49
      %p51 = scmp.ne.s32.totalorder %s40, %s41
      %p52 = scmp.eq.s32.totalorder %s20, 0
      %p53 = por %p51, %p52
      %p54 = scmp.ne.s32.totalorder %s40, %s41
      %p55 = scmp.eq.s32.totalorder %s21, 1
      %p56 = por %p54, %p55
      %p58 = scmp.ne.s32.totalorder %s41, %s57
      %p59 = scmp.eq.s32.totalorder %s21, 0
      %p60 = por %p58, %p59
      %s62 = sadd.s32 %s61, 1
      %p65 = scmp.eq.s32.totalorder %s15, 1
      %p66 = scmp.ne.s32.totalorder %s61, %s63
      %p67 = scmp.eq.s32.totalorder %s15, 0
      %p68 = por %p66, %p67
      %p69 = scmp.ne.s32.totalorder %s61, %s63
      %p70 = scmp.eq.s32.totalorder %s20, 1
      %p71 = por %p69, %p70
      %p72 = scmp.ne.s32.totalorder %s63, %s64
      %p73 = scmp.eq.s32.totalorder %s20, 0
      %p74 = por %p72, %p73
      %p75 = scmp.ne.s32.totalorder %s63, %s64
      %p76 = scmp.eq.s32.totalorder %s21, 1
      %p77 = por %p75, %p76
      %p79 = scmp.ne.s32.totalorder %s64, %s78
      %p80 = scmp.eq.s32.totalorder %s21, 0
      %p81 = por %p79, %p80
      %s82 = ssub.s32 %s22, %s34
      %s83 = ssub.s32 %s23, %s30
      %s84 = sor.u32 %s82, %s83
      %p85 = scmp.eq.s32.totalorder %s84, 0
      %s87 = sadd.s32 %s86, 1
      %s88 = scalar_select %p85, %s86, %s87
      %p91 = pneg %p85
      %p92 = scmp.eq.s32.totalorder %s15, 1
      %p93 = por %p91, %p92
      %p94 = scmp.ne.s32.totalorder %s86, %s89
      %p95 = scmp.eq.s32.totalorder %s15, 0
      %p96 = por %p94, %p95
      %p97 = scmp.ne.s32.totalorder %s86, %s89
      %p98 = scmp.eq.s32.totalorder %s20, 1
      %p99 = por %p97, %p98
      %p100 = scmp.ne.s32.totalorder %s89, %s90
      %p101 = scmp.eq.s32.totalorder %s20, 0
      %p102 = por %p100, %p101
      %p103 = scmp.ne.s32.totalorder %s89, %s90
      %p104 = scmp.eq.s32.totalorder %s21, 1
      %p105 = por %p103, %p104
      %p107 = scmp.ne.s32.totalorder %s90, %s106
      %p108 = scmp.eq.s32.totalorder %s21, 0
      %p109 = por %p107, %p108
      %p110 = scmp.le.s32.totalorder 1, %s15
      %p111 = scmp.lt.s32.totalorder %s15, 3
      %p112 = pnand %p110, %p111
      %p113 = pneg %p112
      // Predicated region
      $region9: #{tpu_custom_call.1} parent=5 // pred_check
        _
      $region10: #{tpu_custom_call.1} parent=5 // pred_check_branch
        %115 = sbr.rel (%p112) target = $region12
      $region11: #{tpu_custom_call.1} parent=5 // pred_region
        %s116 = ssub.s32 %s15, 1
        // Predicated region
        $region13: #{tpu_custom_call.1} parent=11 // pred_check
          %p117 = pneg %p74
        $region14: #{tpu_custom_call.1} parent=11 // pred_check_branch
          %119 = sbr.rel (%p117) target = $region16
        $region15: #{tpu_custom_call.1} parent=11 // pred_region
          %121 = vsyncadd [#allocation9], 0
          %s122 = sshll.u32 %s1, 4
          %s123 = int_to_ptr.hbm [resolvable:$true] %s122
          %s124 = sshll.u32 [#allocation8], 4
          %s125 = int_to_ptr.vmem [resolvable:$true] %s124
          %130 = dma.hbm_to_vmem [thread:$0]  %s123, 256, %s125, [#allocation9], 128, 128, 8
        $region16: #{tpu_custom_call.1} parent=11 // pred_fallthru
          _
      $region12: #{tpu_custom_call.1} parent=5 // pred_fallthru
        _
      %p131 = scmp.lt.s32.totalorder %s15, 2
      // Predicated region
      $region17: #{tpu_custom_call.1} parent=5 // pred_check
        %p132 = pneg %p131
      $region18: #{tpu_custom_call.1} parent=5 // pred_check_branch
        %134 = sbr.rel (%p132) target = $region20
      $region19: #{tpu_custom_call.1} parent=5 // pred_region
        // Predicated region
        $region21: #{tpu_custom_call.1} parent=19 // pred_check
          %p135 = pneg %p47
        $region22: #{tpu_custom_call.1} parent=19 // pred_check_branch
          %137 = sbr.rel (%p135) target = $region24
        $region23: #{tpu_custom_call.1} parent=19 // pred_region
          %s138 = sand.u32 %s37, 1
          %s139 = scalar_lea.sflag [#allocation6], %s138
          %s140 = sand.u32 %s37, 1
          %s141 = smul.addr %s140, 8
          %s142 = scalar_lea.vmem [#allocation5], %s141
          %144 = vsyncadd %s139, 0
          %s145 = smul.addr %s22, 8
          %s146 = scalar_lea.hbm %s0, %s145
          %s148 = sshll.u32 %s146, 4
          %s149 = int_to_ptr.hbm [resolvable:$true] %s148
          %s150 = sshll.u32 %s142, 4
          %s151 = int_to_ptr.vmem [resolvable:$true] %s150
          %153 = dma.hbm_to_vmem [thread:$0]  %s149, 128, %s151, %s139
        $region24: #{tpu_custom_call.1} parent=19 // pred_fallthru
          _
      $region20: #{tpu_custom_call.1} parent=5 // pred_fallthru
        _
      %p154 = scmp.le.s32.totalorder 1, %s15
      %p155 = scmp.lt.s32.totalorder %s15, 3
      %p156 = pnand %p154, %p155
      %p157 = pneg %p156
      // Predicated region
      $region25: #{tpu_custom_call.1} parent=5 // pred_check
        _
      $region26: #{tpu_custom_call.1} parent=5 // pred_check_branch
        %159 = sbr.rel (%p156) target = $region28
      $region27: #{tpu_custom_call.1} parent=5 // pred_region
        %s160 = ssub.s32 %s15, 1
        %s161 = sand.u32 %s40, 1
        %s162 = scalar_lea.sflag [#allocation6], %s161
        %s163 = sand.u32 %s40, 1
        %s164 = smul.addr %s163, 8
        %s165 = scalar_lea.vmem [#allocation5], %s164
        // Predicated region
        $region29: #{tpu_custom_call.1} parent=27 // pred_check
          %p166 = pneg %p53
        $region30: #{tpu_custom_call.1} parent=27 // pred_check_branch
          %168 = sbr.rel (%p166) target = $region32
        $region31: #{tpu_custom_call.1} parent=27 // pred_region
          %170 = dma.done %s162, 128
        $region32: #{tpu_custom_call.1} parent=27 // pred_fallthru
          _
        // Predicated region
        $region33: #{tpu_custom_call.1} parent=27 // pred_check
          %p171 = pneg %p74
        $region34: #{tpu_custom_call.1} parent=27 // pred_check_branch
          %173 = sbr.rel (%p171) target = $region36
        $region35: #{tpu_custom_call.1} parent=27 // pred_region
          %175 = dma.done [#allocation9], 256
        $region36: #{tpu_custom_call.1} parent=27 // pred_fallthru
          _
        %s176 = sand.u32 %s40, 1
        %s177 = scalar_lea.sflag [#allocation6], %s176
        %s178 = sand.u32 %s40, 1
        %s179 = smul.addr %s178, 8
        %s180 = scalar_lea.vmem [#allocation5], %s179
        %p181 = pneg %p53
        %p182 = pneg %p50
        %p183 = pneg %p74
        %p184 = pneg %p71
        %p185 = pneg %p102
        %p186 = pneg %p99
        %s187 = sand.u32 %s89, 1
        %s188 = scalar_lea.sflag [#allocation7], %s187
        %s189 = sand.u32 %s89, 1
        %s190 = smul.addr %s189, 8
        %s191 = scalar_lea.vmem [#allocation10], %s190
        %p192 = scmp.eq.s32.totalorder %s25, 0
        // Predicated region
        $region37: #{tpu_custom_call.1} parent=27 // pred_check
          %p193 = pneg %p192
        $region38: #{tpu_custom_call.1} parent=27 // pred_check_branch
          %195 = sbr.rel (%p193) target = $region40
        $region39: #{tpu_custom_call.1} parent=27 // pred_region
          %v196 = vld [vmem:[%s165] sm:$0xff]
          %v197 = vld [vmem:[#allocation8] sm:$0xff]
          %v198 = vld [vmem:[#allocation8 + $0x8] sm:$0xff]
          %vm199 = vcmask 130048
          %v201 = vsel %vm199, %v196, 0
          %203 = vmatpush.msra.mxu0 0.0
          %204 = vmatpush.msra.mxu0 0.0
          %205 = vmatpush.msra.mxu0 0.0
          %206 = vmatpush.msra.mxu0 0.0
          %207 = vmatpush.msra.mxu0 0.0
          %208 = vmatpush.msra.mxu0 0.0
          %209 = vmatpush.msra.mxu0 0.0
          %210 = vmatpush.msra.mxu0 0.0
          %211 = vmatpush.msra.mxu0 0.0
          %212 = vmatpush.msra.mxu0 0.0
          %213 = vmatpush.msra.mxu0 0.0
          %214 = vmatpush.msra.mxu0 0.0
          %215 = vmatpush.msra.mxu0 0.0
          %216 = vmatpush.msra.mxu0 0.0
          %217 = vmatpush.msra.mxu0 %v198
          %218 = vmatpush.msra.mxu0 %v197
          %219 = vmatmul.f32.gmra.mxu0 %v201
          %v220 = vpop.f32.mrf.mxu0
          %v221 = vadd.f32 0.0, %v220
          %222 = vdwg.mxu0
          %v223 = vmul.f32 %v221, 0.17677669
          %vm224 = vcmask 261120
          %225 = vst.msk [vmem:[#allocation2] sm:$0xff] %vm224, %v223
          %227 = vrot.lane.b32.xlu0 %v221, 96
          %v228 = vpop.permute.xlu0 %227
          %230 = vst.msk [vmem:[#allocation3] sm:$0xff] %vm224, %v228
          %231 = vrot.lane.b32.xlu0 %v221, 64
          %v232 = vpop.permute.xlu0 %231
          %234 = vst.msk [vmem:[#allocation4] sm:$0xff] %vm224, %v232
        $region40: #{tpu_custom_call.1} parent=27 // pred_fallthru
          _
        %s235 = smul.u32 %s25, 8
        %s236 = scalar_lea.vmem [#allocation2], %s235
        %v237 = vld [vmem:[%s236] sm:$0xff]
        %v238 = vld [vmem:[#allocation3] sm:$0xff]
        %vm239 = vcmask 261120
        %v241 = vsel %vm239, %v237, 0
        %v244 = vsel %vm239, %v238, 0
        %246 = vmatpush.xpose.msra.mxu0 0.0
        %247 = vmatpush.xpose.msra.mxu0 0.0
        %248 = vmatpush.xpose.msra.mxu0 0.0
        %249 = vmatpush.xpose.msra.mxu0 0.0
        %250 = vmatpush.xpose.msra.mxu0 0.0
        %251 = vmatpush.xpose.msra.mxu0 0.0
        %252 = vmatpush.xpose.msra.mxu0 0.0
        %253 = vmatpush.xpose.msra.mxu0 0.0
        %254 = vmatpush.xpose.msra.mxu0 0.0
        %255 = vmatpush.xpose.msra.mxu0 0.0
        %256 = vmatpush.xpose.msra.mxu0 0.0
        %257 = vmatpush.xpose.msra.mxu0 0.0
        %258 = vmatpush.xpose.msra.mxu0 0.0
        %259 = vmatpush.xpose.msra.mxu0 0.0
        %260 = vmatpush.xpose.msra.mxu0 0.0
        %261 = vmatpush.xpose.msra.mxu0 %v244
        %262 = vmatmul.f32.gmra.mxu0 %v241
        %v263 = vpop.f32.mrf.mxu0
        %v264 = vadd.f32 0.0, %v263
        %265 = vdwg.mxu0
        %vm266 = vcmask 64512
        %v267 = vsel %vm266, %v264, -inf
        %268 = vmax.xlane.f32.xlu0 %v267
        %v269 = vpop.xlane.xlu0 %268
        %v270 = vsub.f32 %v264, %v269
        %v271 = vmul.f32 %v270, 1.442695
        %v272 = vpow.pop %v271
        %v273 = vsel %vm266, %v272, 0.0
        %274 = vadd.xlane.f32.xlu0 %v273
        %v275 = vpop.xlane.xlu0 %274
        %v276 = vrcp.pop %v275
        %v277 = vmul.f32 %v275, %v276
        %v278 = vsub.f32 2.0, %v277
        %v279 = vmul.f32 %v276, %v278
        %v280 = vmul.f32 %v272, %v279
        %v281 = vld [vmem:[#allocation4] sm:$0xff]
        %v283 = vsel %vm266, %v280, 0
        %285 = vmatpush.msra.mxu0 0.0
        %286 = vmatpush.msra.mxu0 0.0
        %287 = vmatpush.msra.mxu0 0.0
        %288 = vmatpush.msra.mxu0 0.0
        %289 = vmatpush.msra.mxu0 0.0
        %290 = vmatpush.msra.mxu0 0.0
        %291 = vmatpush.msra.mxu0 0.0
        %292 = vmatpush.msra.mxu0 0.0
        %293 = vmatpush.msra.mxu0 0.0
        %294 = vmatpush.msra.mxu0 0.0
        %295 = vmatpush.msra.mxu0 0.0
        %296 = vmatpush.msra.mxu0 0.0
        %297 = vmatpush.msra.mxu0 0.0
        %298 = vmatpush.msra.mxu0 0.0
        %299 = vmatpush.msra.mxu0 0.0
        %300 = vmatpush.msra.mxu0 %v281
        %301 = vmatmul.f32.gmra.mxu0 %v283
        %v302 = vpop.f32.mrf.mxu0
        %v303 = vadd.f32 0.0, %v302
        %304 = vdwg.mxu0
        %305 = vst.msk [vmem:[%s191] sm:$0xff] %vm239, %v303
        %s306 = sand.u32 %s89, 1
        %s307 = scalar_lea.sflag [#allocation7], %s306
        %s308 = sand.u32 %s89, 1
        %s309 = smul.addr %s308, 8
        %s310 = scalar_lea.vmem [#allocation10], %s309
        // Predicated region
        $region41: #{tpu_custom_call.1} parent=27 // pred_check
          %p311 = pneg %p99
        $region42: #{tpu_custom_call.1} parent=27 // pred_check_branch
          %313 = sbr.rel (%p311) target = $region44
        $region43: #{tpu_custom_call.1} parent=27 // pred_region
          %315 = vsyncadd %s307, 0
          %s316 = sadd.s32 %s25, %s24
          %s317 = smul.addr %s316, 8
          %s318 = scalar_lea.hbm %s2, %s317
          %s320 = sshll.u32 %s310, 4
          %s321 = int_to_ptr.vmem [resolvable:$true] %s320
          %s322 = sshll.u32 %s318, 4
          %s323 = int_to_ptr.hbm [resolvable:$true] %s322
          %325 = dma.vmem_to_hbm [thread:$0]  %s321, 128, %s323, %s307
        $region44: #{tpu_custom_call.1} parent=27 // pred_fallthru
          _
      $region28: #{tpu_custom_call.1} parent=5 // pred_fallthru
        _
      %p326 = scmp.le.s32.totalorder 2, %s15
      // Predicated region
      $region45: #{tpu_custom_call.1} parent=5 // pred_check
        %p327 = pneg %p326
      $region46: #{tpu_custom_call.1} parent=5 // pred_check_branch
        %329 = sbr.rel (%p327) target = $region48
      $region47: #{tpu_custom_call.1} parent=5 // pred_region
        %s330 = ssub.s32 %s15, 2
        // Predicated region
        $region49: #{tpu_custom_call.1} parent=47 // pred_check
          %p331 = pneg %p105
        $region50: #{tpu_custom_call.1} parent=47 // pred_check_branch
          %333 = sbr.rel (%p331) target = $region52
        $region51: #{tpu_custom_call.1} parent=47 // pred_region
          %s334 = sand.u32 %s90, 1
          %s335 = scalar_lea.sflag [#allocation7], %s334
          %s336 = sand.u32 %s90, 1
          %s337 = smul.addr %s336, 8
          %s338 = scalar_lea.vmem [#allocation10], %s337
          %340 = dma.done %s335, 128
        $region52: #{tpu_custom_call.1} parent=47 // pred_fallthru
          _
      $region48: #{tpu_custom_call.1} parent=5 // pred_fallthru
        _
    $region6: #{tpu_custom_call.1} parent=1 // loop_footer
      %s19 = sadd.s32 1, %s15
    $region7: #{tpu_custom_call.1} parent=1 // loop_footer_branch
      %14 = sbr.rel target = $region3
    $region8: #{tpu_custom_call.1} parent=1 // loop_exit
      _
    %341 = vsyncpa [#allocation6], 1
    %s342 = scalar_lea.sflag [#allocation6], 1
    %343 = vsyncpa %s342, 1
    %344 = vsyncpa [#allocation9], 1
    %345 = vsyncpa [#allocation7], 1
    %s346 = scalar_lea.sflag [#allocation7], 1
    %347 = vsyncpa %s346, 1

</llo_original>
